<compile_context>
chip_gen: v7x
topology: tpu7x:2x2x1
jax: 0.10.0
libtpu: 0.0.40
codegen_flags: <defaults>
</compile_context>

<pallas_src>
import functools
import math

import numpy as np
import jax
import jax.numpy as jnp
from jax.experimental import pallas as pl
from jax.experimental.pallas import tpu as pltpu

EPS = 1e-5


# ------------------------------ fused Pallas kernel ------------------------------

def _ghost_kernel(shifts, use_mxu, x_ref, w1_ref, b1_ref, mw_ref, bdw_ref, o_ref):
    NB = x_ref.shape[0]
    Cin = x_ref.shape[1]
    Lp = x_ref.shape[-1]                    # padded H*W (lane axis)

    w1 = w1_ref[...]                        # (init_ch, Cin)  bf16 (MXU) / f32 (VPU)
    b1 = b1_ref[...]                        # (init_ch, 1)    f32
    bdw = bdw_ref[...]                      # (new_ch, 1)     f32

    for n in range(NB):                     # static unroll over the batch block
        x = x_ref[n]                        # (Cin, Lp) f32

        # primary 1x1 conv (BN folded into w1/b1) + ReLU.
        if use_mxu:
            y1 = jnp.dot(w1, x.astype(jnp.bfloat16),
                         preferred_element_type=jnp.float32)
        else:
            # tiny channel counts: unrolled f32 VPU multiply-adds (skip MXU + casts).
            y1 = w1[:, 0:1] * x[0:1, :]
            for c in range(1, Cin):
                y1 = y1 + w1[:, c:c + 1] * x[c:c + 1, :]
        y1 = jnp.maximum(y1 + b1, 0.0)      # (init_ch, Lp) f32

        # cheap_operation: depthwise conv (BN folded) + ReLU.  Each tap is one static
        # lane roll (XLU) * precomputed (mask x weight) slab -> one mul + one add.
        acc = None
        for t, s in enumerate(shifts):
            r = (-s) % Lp
            shifted = y1 if r == 0 else pltpu.roll(y1, r, axis=1)
            term = shifted * mw_ref[t]      # (new_ch, Lp)
            acc = term if acc is None else acc + term
        y2 = jnp.maximum(acc + bdw, 0.0)    # (new_ch, Lp) f32

        # tile-aligned stores; concat + slice-to-oup happens in the wrapper for free.
        o_ref[n, 0, :, :] = y1.astype(o_ref.dtype)
        o_ref[n, 1, :, :] = y2.astype(o_ref.dtype)


# ------------------------------ wrapper ------------------------------

def _pick_batch_block(n, per_elem_bytes, target_bytes=1 << 20, max_unroll=8):
    """Largest divisor of n within a working-set budget, keeping >=2 grid steps."""
    if n <= 1:
        return 1
    cap = min(max_unroll, max(1, n // 2))   # >=2 grid steps => both v7x TensorCores
    want = min(cap, max(1, target_bytes // max(per_elem_bytes, 1)))
    for nb in range(int(want), 0, -1):
        if n % nb == 0:
            return nb
    return 1


def ghost_module_forward(x_nchw, params, *, oup, ratio=2, dw_size=3,
                         kernel_size=1, stride=1, out_dtype=jnp.bfloat16):
    # TODO(synk): only the module's default configuration (kernel_size=1, stride=1,
    # ratio=2, i.e. a pure depthwise cheap_operation) is implemented here.
    assert kernel_size == 1 and stride == 1 and ratio == 2
    N, Cin, H, W = x_nchw.shape
    init_ch = math.ceil(oup / ratio)
    new_ch = init_ch * (ratio - 1)
    k = dw_size
    pad = k // 2
    L = H * W
    Lp = ((L + 127) // 128) * 128           # lane-dense rolls + unmasked stores

    use_mxu = Cin > 8                        # tiny-channel 1x1 conv stays on the VPU

    # ---- fold BatchNorm (inference) into the conv weights / biases (trace time) ----
    g1, bt1, mu1, v1 = params['bn1']
    s1 = g1 / jnp.sqrt(v1 + EPS)
    w1f = (params['w1'] * s1[:, None]).astype(
        jnp.bfloat16 if use_mxu else jnp.float32)                     # (init_ch, Cin)
    b1f = (bt1 - mu1 * s1).reshape(init_ch, 1).astype(jnp.float32)

    g2, bt2, mu2, v2 = params['bn2']
    s2 = g2 / jnp.sqrt(v2 + EPS)
    wdwf = params['wdw'].reshape(new_ch, k * k) * s2[:, None]          # (new_ch, k*k)
    bdwf = (bt2 - mu2 * s2).reshape(new_ch, 1).astype(jnp.float32)

    # ---- static flat shifts + boundary masks, pre-multiplied by the dw weights ----
    ii, jj = np.meshgrid(np.arange(H), np.arange(W), indexing='ij')
    shifts, masks = [], []
    for dy in range(k):
        for dx in range(k):
            oy, ox = dy - pad, dx - pad
            shifts.append(oy * W + ox)
            m = ((ii + oy >= 0) & (ii + oy < H) &
                 (jj + ox >= 0) & (jj + ox < W)).astype(np.float32).reshape(-1)
            masks.append(np.pad(m, (0, Lp - L)))                       # zero pad lanes
    mask = jnp.asarray(np.stack(masks))                                # (k*k, Lp)
    mw = (wdwf.T[:, :, None] * mask[:, None, :]).astype(jnp.float32)   # (k*k,new_ch,Lp)

    # ---- input in native f32 (no separate cast pass); pad lanes to Lp if needed ----
    x_flat = x_nchw.reshape(N, Cin, L)
    if Lp != L:
        x_flat = jnp.pad(x_flat, ((0, 0), (0, 0), (0, Lp - L)))

    out_itemsize = np.dtype(out_dtype).itemsize
    per_elem_bytes = Lp * (Cin * 4 + 2 * init_ch * out_itemsize + 4 * init_ch * 4)
    NB = _pick_batch_block(N, per_elem_bytes)

    const_bytes = (w1f.size * w1f.dtype.itemsize + b1f.size * 4
                   + mw.size * 4 + bdwf.size * 4)
    block_bytes = NB * Cin * Lp * 4 + NB * 2 * init_ch * Lp * out_itemsize
    # double-buffered blocks + constants + compute headroom, capped for v7x (64 MiB).
    vmem_limit = int(min(max(2 * block_bytes + 2 * const_bytes + (8 << 20), 16 << 20),
                         32 << 20))

    kernel = functools.partial(_ghost_kernel, tuple(shifts), use_mxu)
    out = pl.pallas_call(
        kernel,
        out_shape=jax.ShapeDtypeStruct((N, 2, init_ch, Lp), out_dtype),
        grid=(N // NB,),
        in_specs=[
            pl.BlockSpec((NB, Cin, Lp), lambda b: (b, 0, 0)),
            # Constant operands (index_map independent of b): not re-fetched across
            # grid steps.  TODO(synk): pipeline_mode=pl.Buffered(1) would also drop
            # their second VMEM buffer; left off for lowering portability.
            pl.BlockSpec((init_ch, Cin), lambda b: (0, 0)),
            pl.BlockSpec((init_ch, 1), lambda b: (0, 0)),
            pl.BlockSpec((k * k, new_ch, Lp), lambda b: (0, 0, 0)),
            pl.BlockSpec((new_ch, 1), lambda b: (0, 0)),
        ],
        out_specs=pl.BlockSpec((NB, 2, init_ch, Lp), lambda b: (b, 0, 0, 0)),
        compiler_params=pltpu.CompilerParams(
            dimension_semantics=("parallel",),
            vmem_limit_bytes=vmem_limit),
    )(x_flat, w1f, b1f, mw, bdwf)

    # concat = free reshape; slice only when oup is odd / spatial is not lane-aligned.
    out = out.reshape(N, 2 * init_ch, Lp)
    if 2 * init_ch != oup:
        out = out[:, :oup]
    if Lp != L:
        out = out[:, :, :L]
    return out.reshape(N, oup, H, W)


# ------------------------------ parameter init ------------------------------

def init_params(key, inp, oup, ratio=2, dw_size=3):
    init_ch = math.ceil(oup / ratio)
    new_ch = init_ch * (ratio - 1)

    def bn_init(k, c):
        k1, k2, k3, k4 = jax.random.split(k, 4)
        return (1.0 + 0.1 * jax.random.normal(k1, (c,), jnp.float32),
                0.05 * jax.random.normal(k2, (c,), jnp.float32),
                0.1 * jax.random.normal(k3, (c,), jnp.float32),
                0.5 + jax.random.uniform(k4, (c,), jnp.float32))

    k1, k2, k3, k4 = jax.random.split(key, 4)
    return dict(
        w1=jax.random.normal(k1, (init_ch, inp), jnp.float32) / math.sqrt(inp),
        bn1=bn_init(k2, init_ch),
        wdw=jax.random.normal(k3, (new_ch, dw_size, dw_size), jnp.float32) / float(dw_size),
        bn2=bn_init(k4, new_ch),
    )


# ------------------------------ pure-JAX reference ------------------------------

def ghost_module_reference(x, params, *, oup, ratio=2, dw_size=3):
    N, Cin, H, W = x.shape
    init_ch = math.ceil(oup / ratio)
    new_ch = init_ch * (ratio - 1)
    k = dw_size
    pad = k // 2

    def bn(y, p):
        g, b, m, v = p
        return ((y - m[:, None, None]) * (g / jnp.sqrt(v + EPS))[:, None, None]
                + b[:, None, None])

    y1 = jnp.einsum('ncij,oc->noij', x, params['w1'], precision='highest')
    y1 = jnp.maximum(bn(y1, params['bn1']), 0.0)

    y1p = jnp.pad(y1, ((0, 0), (0, 0), (pad, pad), (pad, pad)))
    wdw = params['wdw']                      # (new_ch, k, k); ratio==2 => depthwise
    acc = jnp.zeros((N, new_ch, H, W), jnp.float32)
    for dy in range(k):
        for dx in range(k):
            acc = acc + y1p[:, :, dy:dy + H, dx:dx + W] * wdw[:, dy, dx][None, :, None, None]
    y2 = jnp.maximum(bn(acc, params['bn2']), 0.0)
    return jnp.concatenate([y1, y2], axis=1)[:, :oup]


# ------------------------------ main ------------------------------

if __name__ == "__main__":
    key = jax.random.PRNGKey(0)

    def run_case(case_key, N, inp, oup, H, W, atol, rtol, ratio=2, dw_size=3):
        kx, kp = jax.random.split(case_key)
        x = jax.random.normal(kx, (N, inp, H, W), jnp.float32)
        params = init_params(kp, inp, oup, ratio=ratio, dw_size=dw_size)
        fwd = jax.jit(functools.partial(ghost_module_forward, params=params, oup=oup,
                                        ratio=ratio, dw_size=dw_size))
        out = jax.block_until_ready(fwd(x))
        assert out.shape == (N, oup, H, W), out.shape
        ref = ghost_module_reference(x, params, oup=oup, ratio=ratio, dw_size=dw_size)
        out32 = out.astype(jnp.float32)
        if not jnp.allclose(out32, ref, atol=atol, rtol=rtol):
            raise AssertionError("mismatch vs reference: max abs diff = %g"
                                 % float(jnp.max(jnp.abs(out32 - ref))))

    # Small config from the spec: f32 VPU 1x1-conv path, L=256 already lane-aligned.
    run_case(jax.random.fold_in(key, 0), N=2, inp=4, oup=8, H=16, W=16,
             atol=3e-2, rtol=2e-2)
    # MXU path + batch blocking (NB>1) + non-multiple-of-128 spatial (14x14 -> pad).
    run_case(jax.random.fold_in(key, 1), N=8, inp=32, oup=64, H=14, W=14,
             atol=1e-1, rtol=5e-2)

    print("KERNEL_OK")
</pallas_src>

<mosaic_0001>
module attributes {stable_mosaic.version = 11 : i64} {
  func.func @_ghost_kernel(%arg0: i32, %arg1: memref<1x4x256xf32, #tpu.memory_space<vmem>>, %arg2: memref<4x4xf32, #tpu.memory_space<vmem>>, %arg3: memref<4x1xf32, #tpu.memory_space<vmem>>, %arg4: memref<9x4x256xf32, #tpu.memory_space<vmem>>, %arg5: memref<4x1xf32, #tpu.memory_space<vmem>>, %arg6: memref<1x2x4x256xbf16, #tpu.memory_space<vmem>>) attributes {dimension_semantics = [#tpu.dimension_semantics<parallel>], iteration_bounds = array<i64: 2>, scalar_prefetch = 0 : i64, scratch_operands = 0 : i64, tpu.core_type = #tpu.core_type<tc>, window_params = [{transform_indices = @transform_0, window_bounds = array<i64: 1, 4, 256>}, {pipeline_mode = #tpu.pipeline_mode<synchronous>, transform_indices = @transform_1, window_bounds = array<i64: 4, 4>}, {pipeline_mode = #tpu.pipeline_mode<synchronous>, transform_indices = @transform_2, window_bounds = array<i64: 4, 1>}, {pipeline_mode = #tpu.pipeline_mode<synchronous>, transform_indices = @transform_3, window_bounds = array<i64: 9, 4, 256>}, {pipeline_mode = #tpu.pipeline_mode<synchronous>, transform_indices = @transform_4, window_bounds = array<i64: 4, 1>}, {transform_indices = @transform_5, window_bounds = array<i64: 1, 2, 4, 256>}]} {
    %c0 = arith.constant 0 : index
    %c0_0 = arith.constant 0 : index
    %0 = vector.load %arg2[%c0, %c0_0] : memref<4x4xf32, #tpu.memory_space<vmem>>, vector<4x4xf32>
    %c0_1 = arith.constant 0 : index
    %c0_2 = arith.constant 0 : index
    %1 = vector.load %arg3[%c0_1, %c0_2] : memref<4x1xf32, #tpu.memory_space<vmem>>, vector<4x1xf32>
    %c0_3 = arith.constant 0 : index
    %c0_4 = arith.constant 0 : index
    %2 = vector.load %arg5[%c0_3, %c0_4] : memref<4x1xf32, #tpu.memory_space<vmem>>, vector<4x1xf32>
    %c0_5 = arith.constant 0 : index
    %c0_6 = arith.constant 0 : index
    %c0_7 = arith.constant 0 : index
    %3 = vector.load %arg1[%c0_5, %c0_6, %c0_7] : memref<1x4x256xf32, #tpu.memory_space<vmem>>, vector<1x4x256xf32>
    %4 = vector.shape_cast %3 : vector<1x4x256xf32> to vector<4x256xf32>
    %5 = vector.extract_strided_slice %0 {offsets = [0, 0], sizes = [4, 1], strides = [1, 1]} : vector<4x4xf32> to vector<4x1xf32>
    %6 = vector.extract_strided_slice %4 {offsets = [0, 0], sizes = [1, 256], strides = [1, 1]} : vector<4x256xf32> to vector<1x256xf32>
    %7 = vector.broadcast %5 : vector<4x1xf32> to vector<4x256xf32>
    %8 = vector.broadcast %6 : vector<1x256xf32> to vector<4x256xf32>
    %9 = arith.mulf %7, %8 : vector<4x256xf32>
    %10 = vector.extract_strided_slice %0 {offsets = [0, 1], sizes = [4, 1], strides = [1, 1]} : vector<4x4xf32> to vector<4x1xf32>
    %11 = vector.extract_strided_slice %4 {offsets = [1, 0], sizes = [1, 256], strides = [1, 1]} : vector<4x256xf32> to vector<1x256xf32>
    %12 = vector.broadcast %10 : vector<4x1xf32> to vector<4x256xf32>
    %13 = vector.broadcast %11 : vector<1x256xf32> to vector<4x256xf32>
    %14 = arith.mulf %12, %13 : vector<4x256xf32>
    %15 = arith.addf %9, %14 : vector<4x256xf32>
    %16 = vector.extract_strided_slice %0 {offsets = [0, 2], sizes = [4, 1], strides = [1, 1]} : vector<4x4xf32> to vector<4x1xf32>
    %17 = vector.extract_strided_slice %4 {offsets = [2, 0], sizes = [1, 256], strides = [1, 1]} : vector<4x256xf32> to vector<1x256xf32>
    %18 = vector.broadcast %16 : vector<4x1xf32> to vector<4x256xf32>
    %19 = vector.broadcast %17 : vector<1x256xf32> to vector<4x256xf32>
    %20 = arith.mulf %18, %19 : vector<4x256xf32>
    %21 = arith.addf %15, %20 : vector<4x256xf32>
    %22 = vector.extract_strided_slice %0 {offsets = [0, 3], sizes = [4, 1], strides = [1, 1]} : vector<4x4xf32> to vector<4x1xf32>
    %23 = vector.extract_strided_slice %4 {offsets = [3, 0], sizes = [1, 256], strides = [1, 1]} : vector<4x256xf32> to vector<1x256xf32>
    %24 = vector.broadcast %22 : vector<4x1xf32> to vector<4x256xf32>
    %25 = vector.broadcast %23 : vector<1x256xf32> to vector<4x256xf32>
    %26 = arith.mulf %24, %25 : vector<4x256xf32>
    %27 = arith.addf %21, %26 : vector<4x256xf32>
    %28 = vector.broadcast %1 : vector<4x1xf32> to vector<4x256xf32>
    %29 = arith.addf %27, %28 : vector<4x256xf32>
    %cst = arith.constant 0.000000e+00 : f32
    %30 = vector.broadcast %cst : f32 to vector<4x256xf32>
    %31 = arith.maximumf %29, %30 : vector<4x256xf32>
    %c17_i32 = arith.constant 17 : i32
    %32 = tpu.dynamic_rotate %31 by %c17_i32 dim 1 : vector<4x256xf32>, i32 -> vector<4x256xf32>
    %c0_8 = arith.constant 0 : index
    %c0_9 = arith.constant 0 : index
    %c0_10 = arith.constant 0 : index
    %33 = vector.load %arg4[%c0_8, %c0_9, %c0_10] : memref<9x4x256xf32, #tpu.memory_space<vmem>>, vector<1x4x256xf32>
    %34 = vector.shape_cast %33 : vector<1x4x256xf32> to vector<4x256xf32>
    %35 = arith.mulf %32, %34 : vector<4x256xf32>
    %c16_i32 = arith.constant 16 : i32
    %36 = tpu.dynamic_rotate %31 by %c16_i32 dim 1 : vector<4x256xf32>, i32 -> vector<4x256xf32>
    %c1 = arith.constant 1 : index
    %c0_11 = arith.constant 0 : index
    %c0_12 = arith.constant 0 : index
    %37 = vector.load %arg4[%c1, %c0_11, %c0_12] : memref<9x4x256xf32, #tpu.memory_space<vmem>>, vector<1x4x256xf32>
    %38 = vector.shape_cast %37 : vector<1x4x256xf32> to vector<4x256xf32>
    %39 = arith.mulf %36, %38 : vector<4x256xf32>
    %40 = arith.addf %35, %39 : vector<4x256xf32>
    %c15_i32 = arith.constant 15 : i32
    %41 = tpu.dynamic_rotate %31 by %c15_i32 dim 1 : vector<4x256xf32>, i32 -> vector<4x256xf32>
    %c2 = arith.constant 2 : index
    %c0_13 = arith.constant 0 : index
    %c0_14 = arith.constant 0 : index
    %42 = vector.load %arg4[%c2, %c0_13, %c0_14] : memref<9x4x256xf32, #tpu.memory_space<vmem>>, vector<1x4x256xf32>
    %43 = vector.shape_cast %42 : vector<1x4x256xf32> to vector<4x256xf32>
    %44 = arith.mulf %41, %43 : vector<4x256xf32>
    %45 = arith.addf %40, %44 : vector<4x256xf32>
    %c1_i32 = arith.constant 1 : i32
    %46 = tpu.dynamic_rotate %31 by %c1_i32 dim 1 : vector<4x256xf32>, i32 -> vector<4x256xf32>
    %c3 = arith.constant 3 : index
    %c0_15 = arith.constant 0 : index
    %c0_16 = arith.constant 0 : index
    %47 = vector.load %arg4[%c3, %c0_15, %c0_16] : memref<9x4x256xf32, #tpu.memory_space<vmem>>, vector<1x4x256xf32>
    %48 = vector.shape_cast %47 : vector<1x4x256xf32> to vector<4x256xf32>
    %49 = arith.mulf %46, %48 : vector<4x256xf32>
    %50 = arith.addf %45, %49 : vector<4x256xf32>
    %c4 = arith.constant 4 : index
    %c0_17 = arith.constant 0 : index
    %c0_18 = arith.constant 0 : index
    %51 = vector.load %arg4[%c4, %c0_17, %c0_18] : memref<9x4x256xf32, #tpu.memory_space<vmem>>, vector<1x4x256xf32>
    %52 = vector.shape_cast %51 : vector<1x4x256xf32> to vector<4x256xf32>
    %53 = arith.mulf %31, %52 : vector<4x256xf32>
    %54 = arith.addf %50, %53 : vector<4x256xf32>
    %c255_i32 = arith.constant 255 : i32
    %55 = tpu.dynamic_rotate %31 by %c255_i32 dim 1 : vector<4x256xf32>, i32 -> vector<4x256xf32>
    %c5 = arith.constant 5 : index
    %c0_19 = arith.constant 0 : index
    %c0_20 = arith.constant 0 : index
    %56 = vector.load %arg4[%c5, %c0_19, %c0_20] : memref<9x4x256xf32, #tpu.memory_space<vmem>>, vector<1x4x256xf32>
    %57 = vector.shape_cast %56 : vector<1x4x256xf32> to vector<4x256xf32>
    %58 = arith.mulf %55, %57 : vector<4x256xf32>
    %59 = arith.addf %54, %58 : vector<4x256xf32>
    %c241_i32 = arith.constant 241 : i32
    %60 = tpu.dynamic_rotate %31 by %c241_i32 dim 1 : vector<4x256xf32>, i32 -> vector<4x256xf32>
    %c6 = arith.constant 6 : index
    %c0_21 = arith.constant 0 : index
    %c0_22 = arith.constant 0 : index
    %61 = vector.load %arg4[%c6, %c0_21, %c0_22] : memref<9x4x256xf32, #tpu.memory_space<vmem>>, vector<1x4x256xf32>
    %62 = vector.shape_cast %61 : vector<1x4x256xf32> to vector<4x256xf32>
    %63 = arith.mulf %60, %62 : vector<4x256xf32>
    %64 = arith.addf %59, %63 : vector<4x256xf32>
    %c240_i32 = arith.constant 240 : i32
    %65 = tpu.dynamic_rotate %31 by %c240_i32 dim 1 : vector<4x256xf32>, i32 -> vector<4x256xf32>
    %c7 = arith.constant 7 : index
    %c0_23 = arith.constant 0 : index
    %c0_24 = arith.constant 0 : index
    %66 = vector.load %arg4[%c7, %c0_23, %c0_24] : memref<9x4x256xf32, #tpu.memory_space<vmem>>, vector<1x4x256xf32>
    %67 = vector.shape_cast %66 : vector<1x4x256xf32> to vector<4x256xf32>
    %68 = arith.mulf %65, %67 : vector<4x256xf32>
    %69 = arith.addf %64, %68 : vector<4x256xf32>
    %c239_i32 = arith.constant 239 : i32
    %70 = tpu.dynamic_rotate %31 by %c239_i32 dim 1 : vector<4x256xf32>, i32 -> vector<4x256xf32>
    %c8 = arith.constant 8 : index
    %c0_25 = arith.constant 0 : index
    %c0_26 = arith.constant 0 : index
    %71 = vector.load %arg4[%c8, %c0_25, %c0_26] : memref<9x4x256xf32, #tpu.memory_space<vmem>>, vector<1x4x256xf32>
    %72 = vector.shape_cast %71 : vector<1x4x256xf32> to vector<4x256xf32>
    %73 = arith.mulf %70, %72 : vector<4x256xf32>
    %74 = arith.addf %69, %73 : vector<4x256xf32>
    %75 = vector.broadcast %2 : vector<4x1xf32> to vector<4x256xf32>
    %76 = arith.addf %74, %75 : vector<4x256xf32>
    %cst_27 = arith.constant 0.000000e+00 : f32
    %77 = vector.broadcast %cst_27 : f32 to vector<4x256xf32>
    %78 = arith.maximumf %76, %77 : vector<4x256xf32>
    %79 = arith.truncf %31 : vector<4x256xf32> to vector<4x256xbf16>
    %c0_28 = arith.constant 0 : index
    %c0_29 = arith.constant 0 : index
    %c0_30 = arith.constant 0 : index
    %c0_31 = arith.constant 0 : index
    %80 = vector.load %arg6[%c0_28, %c0_29, %c0_30, %c0_31] : memref<1x2x4x256xbf16, #tpu.memory_space<vmem>>, vector<1x1x4x256xbf16>
    %81 = vector.shape_cast %80 : vector<1x1x4x256xbf16> to vector<4x256xbf16>
    %82 = vector.shape_cast %79 : vector<4x256xbf16> to vector<1x1x4x256xbf16>
    tpu.vector_store %arg6[%c0_28, %c0_29, %c0_30, %c0_31], %82 {strides = array<i32>} : memref<1x2x4x256xbf16, #tpu.memory_space<vmem>>, vector<1x1x4x256xbf16>,
    %83 = arith.truncf %78 : vector<4x256xf32> to vector<4x256xbf16>
    %c0_32 = arith.constant 0 : index
    %c1_33 = arith.constant 1 : index
    %c0_34 = arith.constant 0 : index
    %c0_35 = arith.constant 0 : index
    %84 = vector.load %arg6[%c0_32, %c1_33, %c0_34, %c0_35] : memref<1x2x4x256xbf16, #tpu.memory_space<vmem>>, vector<1x1x4x256xbf16>
    %85 = vector.shape_cast %84 : vector<1x1x4x256xbf16> to vector<4x256xbf16>
    %86 = vector.shape_cast %83 : vector<4x256xbf16> to vector<1x1x4x256xbf16>
    tpu.vector_store %arg6[%c0_32, %c1_33, %c0_34, %c0_35], %86 {strides = array<i32>} : memref<1x2x4x256xbf16, #tpu.memory_space<vmem>>, vector<1x1x4x256xbf16>,
    return
  }
  func.func @transform_0(%arg0: i32) -> (i32, i32, i32) {
    %c0_i32 = arith.constant 0 : i32
    %c0_i32_0 = arith.constant 0 : i32
    %c0_i32_1 = arith.constant 0 : i32
    return %arg0, %c0_i32, %c0_i32_0 : i32, i32, i32
  }
  func.func @transform_1(%arg0: i32) -> (i32, i32) {
    %c0_i32 = arith.constant 0 : i32
    %c0_i32_0 = arith.constant 0 : i32
    %c0_i32_1 = arith.constant 0 : i32
    return %c0_i32, %c0_i32_0 : i32, i32
  }
  func.func @transform_2(%arg0: i32) -> (i32, i32) {
    %c0_i32 = arith.constant 0 : i32
    %c0_i32_0 = arith.constant 0 : i32
    %c0_i32_1 = arith.constant 0 : i32
    return %c0_i32, %c0_i32_0 : i32, i32
  }
  func.func @transform_3(%arg0: i32) -> (i32, i32, i32) {
    %c0_i32 = arith.constant 0 : i32
    %c0_i32_0 = arith.constant 0 : i32
    %c0_i32_1 = arith.constant 0 : i32
    %c0_i32_2 = arith.constant 0 : i32
    return %c0_i32, %c0_i32_0, %c0_i32_1 : i32, i32, i32
  }
  func.func @transform_4(%arg0: i32) -> (i32, i32) {
    %c0_i32 = arith.constant 0 : i32
    %c0_i32_0 = arith.constant 0 : i32
    %c0_i32_1 = arith.constant 0 : i32
    return %c0_i32, %c0_i32_0 : i32, i32
  }
  func.func @transform_5(%arg0: i32) -> (i32, i32, i32, i32) {
    %c0_i32 = arith.constant 0 : i32
    %c0_i32_0 = arith.constant 0 : i32
    %c0_i32_1 = arith.constant 0 : i32
    %c0_i32_2 = arith.constant 0 : i32
    return %arg0, %c0_i32, %c0_i32_0, %c0_i32_1 : i32, i32, i32, i32
  }
}

</mosaic_0001>

<llo_original>
// kernel: ghost_module_forward.1
$region0: #{ghost_module_forward.1}
  #allocation0 [shape = 'u32[]', space=smem, size = 0x4, offset = 0x4, fixed_abs, tag = 'smem constant byte address 0x4 - core index']
  #allocation1 [shape = 'u32[144,128]{1,0:T(1,128)}', space=vmem, size = 0x12000, scoped, tag = 'internal scratch']
  %s0 = inlined_call_operand.vmem [shape: f32[2,4,256], index: 0, kind: input, shape index: {}]
  %s1 = inlined_call_operand.vmem [shape: f32[4,4], index: 1, kind: input, shape index: {}]
  %s2 = inlined_call_operand.vmem [shape: f32[4,1], index: 2, kind: input, shape index: {}]
  %s3 = inlined_call_operand.vmem [shape: f32[9,4,256], index: 3, kind: input, shape index: {}]
  %s4 = inlined_call_operand.vmem [shape: f32[4,1], index: 4, kind: input, shape index: {}]
  %s5 = inlined_call_operand.vmem [shape: bf16[2,2,4,256], index: 5, kind: output, shape index: {}]
  %s6 = sld [smem:[#allocation0]]
  $region53: #{ghost_module_forward.1} parent=0
    _
  %s8 = ssub.s32 1, %s6
  %s9 = scalar_select 0, %s8, %s6
  loop: start=0, step=1, limit=4
  $region2: #{ghost_module_forward.1} parent=0 // loop_pre_header
    _
  $region3: #{ghost_module_forward.1} parent=0 // loop_header
    %s11 = sphi 0, %s15
    %p12 = scmp.ge.s32.totalorder %s11, 4
    %s21 = sphi 0, %s23
    %s24 = sphi 0, %s21
    %s25 = sphi 0, %s24
    %s41 = sphi 0, %s25
    %s45 = sphi 0, %s45
    %s47 = sphi 0, %s45
    %s48 = sphi 0, %s47
    %s62 = sphi 0, %s48
    %s66 = sphi 0, %s66
    %s68 = sphi 0, %s66
    %s69 = sphi 0, %s68
    %s83 = sphi 0, %s69
    %s87 = sphi 0, %s87
    %s89 = sphi 0, %s87
    %s90 = sphi 0, %s89
    %s104 = sphi 0, %s90
    %s108 = sphi 0, %s108
    %s110 = sphi 0, %s108
    %s111 = sphi 0, %s110
    %s125 = sphi 0, %s111
    %s131 = sphi 0, %s133
    %s134 = sphi 0, %s131
    %s135 = sphi 0, %s134
    %s151 = sphi 0, %s135
  $region4: #{ghost_module_forward.1} parent=0 // loop_header_branch
    %14 = sbr.rel (%p12) target = $region8
  $region5: #{ghost_module_forward.1} parent=0 // loop_body
    %s16 = ssub.s32 %s11, 1
    %s17 = ssub.s32 %s11, 2
    %s18 = sadd.s32 %s11, 1
    %s19 = ssub.s32 %s11, %s18
    %p20 = scmp.eq.s32.totalorder %s19, 0
    %s22 = sadd.s32 %s21, 1
    %s23 = scalar_select %p20, %s21, %s22
    %p26 = pneg %p20
    %p27 = scmp.eq.s32.totalorder %s11, 1
    %p28 = por %p26, %p27
    %p29 = scmp.ne.s32.totalorder %s21, %s24
    %p30 = scmp.eq.s32.totalorder %s11, 0
    %p31 = por %p29, %p30
    %p32 = scmp.ne.s32.totalorder %s21, %s24
    %p33 = scmp.eq.s32.totalorder %s16, 1
    %p34 = por %p32, %p33
    %p35 = scmp.ne.s32.totalorder %s24, %s25
    %p36 = scmp.eq.s32.totalorder %s16, 0
    %p37 = por %p35, %p36
    %p38 = scmp.ne.s32.totalorder %s24, %s25
    %p39 = scmp.eq.s32.totalorder %s17, 1
    %p40 = por %p38, %p39
    %p42 = scmp.ne.s32.totalorder %s25, %s41
    %p43 = scmp.eq.s32.totalorder %s17, 0
    %p44 = por %p42, %p43
    %s46 = sadd.s32 %s45, 1
    %p49 = scmp.eq.s32.totalorder %s11, 1
    %p50 = scmp.ne.s32.totalorder %s45, %s47
    %p51 = scmp.eq.s32.totalorder %s11, 0
    %p52 = por %p50, %p51
    %p53 = scmp.ne.s32.totalorder %s45, %s47
    %p54 = scmp.eq.s32.totalorder %s16, 1
    %p55 = por %p53, %p54
    %p56 = scmp.ne.s32.totalorder %s47, %s48
    %p57 = scmp.eq.s32.totalorder %s16, 0
    %p58 = por %p56, %p57
    %p59 = scmp.ne.s32.totalorder %s47, %s48
    %p60 = scmp.eq.s32.totalorder %s17, 1
    %p61 = por %p59, %p60
    %p63 = scmp.ne.s32.totalorder %s48, %s62
    %p64 = scmp.eq.s32.totalorder %s17, 0
    %p65 = por %p63, %p64
    %s67 = sadd.s32 %s66, 1
    %p70 = scmp.eq.s32.totalorder %s11, 1
    %p71 = scmp.ne.s32.totalorder %s66, %s68
    %p72 = scmp.eq.s32.totalorder %s11, 0
    %p73 = por %p71, %p72
    %p74 = scmp.ne.s32.totalorder %s66, %s68
    %p75 = scmp.eq.s32.totalorder %s16, 1
    %p76 = por %p74, %p75
    %p77 = scmp.ne.s32.totalorder %s68, %s69
    %p78 = scmp.eq.s32.totalorder %s16, 0
    %p79 = por %p77, %p78
    %p80 = scmp.ne.s32.totalorder %s68, %s69
    %p81 = scmp.eq.s32.totalorder %s17, 1
    %p82 = por %p80, %p81
    %p84 = scmp.ne.s32.totalorder %s69, %s83
    %p85 = scmp.eq.s32.totalorder %s17, 0
    %p86 = por %p84, %p85
    %s88 = sadd.s32 %s87, 1
    %p91 = scmp.eq.s32.totalorder %s11, 1
    %p92 = scmp.ne.s32.totalorder %s87, %s89
    %p93 = scmp.eq.s32.totalorder %s11, 0
    %p94 = por %p92, %p93
    %p95 = scmp.ne.s32.totalorder %s87, %s89
    %p96 = scmp.eq.s32.totalorder %s16, 1
    %p97 = por %p95, %p96
    %p98 = scmp.ne.s32.totalorder %s89, %s90
    %p99 = scmp.eq.s32.totalorder %s16, 0
    %p100 = por %p98, %p99
    %p101 = scmp.ne.s32.totalorder %s89, %s90
    %p102 = scmp.eq.s32.totalorder %s17, 1
    %p103 = por %p101, %p102
    %p105 = scmp.ne.s32.totalorder %s90, %s104
    %p106 = scmp.eq.s32.totalorder %s17, 0
    %p107 = por %p105, %p106
    %s109 = sadd.s32 %s108, 1
    %p112 = scmp.eq.s32.totalorder %s11, 1
    %p113 = scmp.ne.s32.totalorder %s108, %s110
    %p114 = scmp.eq.s32.totalorder %s11, 0
    %p115 = por %p113, %p114
    %p116 = scmp.ne.s32.totalorder %s108, %s110
    %p117 = scmp.eq.s32.totalorder %s16, 1
    %p118 = por %p116, %p117
    %p119 = scmp.ne.s32.totalorder %s110, %s111
    %p120 = scmp.eq.s32.totalorder %s16, 0
    %p121 = por %p119, %p120
    %p122 = scmp.ne.s32.totalorder %s110, %s111
    %p123 = scmp.eq.s32.totalorder %s17, 1
    %p124 = por %p122, %p123
    %p126 = scmp.ne.s32.totalorder %s111, %s125
    %p127 = scmp.eq.s32.totalorder %s17, 0
    %p128 = por %p126, %p127
    %s129 = ssub.s32 %s11, %s18
    %p130 = scmp.eq.s32.totalorder %s129, 0
    %s132 = sadd.s32 %s131, 1
    %s133 = scalar_select %p130, %s131, %s132
    %p136 = pneg %p130
    %p137 = scmp.eq.s32.totalorder %s11, 1
    %p138 = por %p136, %p137
    %p139 = scmp.ne.s32.totalorder %s131, %s134
    %p140 = scmp.eq.s32.totalorder %s11, 0
    %p141 = por %p139, %p140
    %p142 = scmp.ne.s32.totalorder %s131, %s134
    %p143 = scmp.eq.s32.totalorder %s16, 1
    %p144 = por %p142, %p143
    %p145 = scmp.ne.s32.totalorder %s134, %s135
    %p146 = scmp.eq.s32.totalorder %s16, 0
    %p147 = por %p145, %p146
    %p148 = scmp.ne.s32.totalorder %s134, %s135
    %p149 = scmp.eq.s32.totalorder %s17, 1
    %p150 = por %p148, %p149
    %p152 = scmp.ne.s32.totalorder %s135, %s151
    %p153 = scmp.eq.s32.totalorder %s17, 0
    %p154 = por %p152, %p153
    %p155 = scmp.le.s32.totalorder 1, %s11
    %p156 = scmp.lt.s32.totalorder %s11, 3
    %p157 = pnand %p155, %p156
    %p158 = pneg %p157
    // Predicated region
    $region9: #{ghost_module_forward.1} parent=5 // pred_check
      _
    $region10: #{ghost_module_forward.1} parent=5 // pred_check_branch
      %160 = sbr.rel (%p157) target = $region12
    $region11: #{ghost_module_forward.1} parent=5 // pred_region
      %s161 = ssub.s32 %s11, 1
      // Predicated region
      $region13: #{ghost_module_forward.1} parent=11 // pred_check
        %p162 = pneg %p58
      $region14: #{ghost_module_forward.1} parent=11 // pred_check_branch
        %164 = sbr.rel (%p162) target = $region16
      $region15: #{ghost_module_forward.1} parent=11 // pred_region
        _
      $region16: #{ghost_module_forward.1} parent=11 // pred_fallthru
        _
      // Predicated region
      $region17: #{ghost_module_forward.1} parent=11 // pred_check
        %p165 = pneg %p79
      $region18: #{ghost_module_forward.1} parent=11 // pred_check_branch
        %167 = sbr.rel (%p165) target = $region20
      $region19: #{ghost_module_forward.1} parent=11 // pred_region
        _
      $region20: #{ghost_module_forward.1} parent=11 // pred_fallthru
        _
      // Predicated region
      $region21: #{ghost_module_forward.1} parent=11 // pred_check
        %p168 = pneg %p100
      $region22: #{ghost_module_forward.1} parent=11 // pred_check_branch
        %170 = sbr.rel (%p168) target = $region24
      $region23: #{ghost_module_forward.1} parent=11 // pred_region
        _
      $region24: #{ghost_module_forward.1} parent=11 // pred_fallthru
        _
      // Predicated region
      $region25: #{ghost_module_forward.1} parent=11 // pred_check
        %p171 = pneg %p121
      $region26: #{ghost_module_forward.1} parent=11 // pred_check_branch
        %173 = sbr.rel (%p171) target = $region28
      $region27: #{ghost_module_forward.1} parent=11 // pred_region
        _
      $region28: #{ghost_module_forward.1} parent=11 // pred_fallthru
        _
    $region12: #{ghost_module_forward.1} parent=5 // pred_fallthru
      _
    %p174 = scmp.lt.s32.totalorder %s11, 2
    // Predicated region
    $region29: #{ghost_module_forward.1} parent=5 // pred_check
      %p175 = pneg %p174
    $region30: #{ghost_module_forward.1} parent=5 // pred_check_branch
      %177 = sbr.rel (%p175) target = $region32
    $region31: #{ghost_module_forward.1} parent=5 // pred_region
      // Predicated region
      $region33: #{ghost_module_forward.1} parent=31 // pred_check
        %p178 = pneg %p31
      $region34: #{ghost_module_forward.1} parent=31 // pred_check_branch
        %180 = sbr.rel (%p178) target = $region36
      $region35: #{ghost_module_forward.1} parent=31 // pred_region
        %p181 = scmp.lt.s32.totalorder %s11, 1
        %s182 = scalar_select %p181, %s11, 1
        %s183 = smul.addr %s182, 2
        %s184 = smul.addr %s183, 4
        %s185 = scalar_lea.vmem %s0, %s184
      $region36: #{ghost_module_forward.1} parent=31 // pred_fallthru
        _
    $region32: #{ghost_module_forward.1} parent=5 // pred_fallthru
      _
    %p186 = scmp.le.s32.totalorder 1, %s11
    %p187 = scmp.lt.s32.totalorder %s11, 3
    %p188 = pnand %p186, %p187
    %p189 = pneg %p188
    // Predicated region
    $region37: #{ghost_module_forward.1} parent=5 // pred_check
      _
    $region38: #{ghost_module_forward.1} parent=5 // pred_check_branch
      %191 = sbr.rel (%p188) target = $region40
    $region39: #{ghost_module_forward.1} parent=5 // pred_region
      %s192 = ssub.s32 %s11, 1
      %p193 = scmp.lt.s32.totalorder %s16, 1
      %s194 = scalar_select %p193, %s16, 1
      %s195 = smul.addr %s194, 2
      %s196 = smul.addr %s195, 4
      %s197 = scalar_lea.vmem %s0, %s196
      %p198 = pneg %p37
      %p199 = pneg %p34
      %p200 = pneg %p58
      %p201 = pneg %p55
      %p202 = pneg %p79
      %p203 = pneg %p76
      %p204 = pneg %p100
      %p205 = pneg %p97
      %p206 = pneg %p121
      %p207 = pneg %p118
      %p208 = pneg %p147
      %p209 = pneg %p144
      %p210 = scmp.lt.s32.totalorder %s16, 1
      %s211 = scalar_select %p210, %s16, 1
      %s212 = smul.addr %s211, 4
      %s213 = smul.addr %s212, 2
      %s214 = scalar_lea.vmem %s5, %s213
      %p215 = scmp.lt.s32.totalorder %s16, 1
      %s216 = scalar_select %p215, %s16, 1
      %s217 = smul.addr %s216, 2
      %s218 = smul.addr %s217, 4
      %s219 = scalar_lea.vmem %s0, %s218
      %p220 = scmp.lt.s32.totalorder %s16, 1
      %s221 = scalar_select %p220, %s16, 1
      %s222 = smul.addr %s221, 4
      %s223 = smul.addr %s222, 2
      %s224 = scalar_lea.vmem %s5, %s223
      %v225 = vld [vmem:[%s1] sm:$0xf]
      %v226 = vld [vmem:[%s2] sm:$0xf]
      %v227 = vld [vmem:[%s4] sm:$0xf]
      %v228 = vld [vmem:[%s219] sm:$0xff]
      %230 = vset.pattern.permute.xlu0 0
      %231 = vperm.xlu0 %230, %v225
      %v232 = vpop.permute.xlu0 %231
      %v235 = vlaneseq
      %v236 = vshrl.u32 %v235, 7
      %v237 = vsub.s32 0, %v236
      %v238 = vrot.slane %v228, %v237
      %v239 = vlaneseq
      %v240 = vshrl.u32 %v239, 7
      %v241 = vsub.s32 4, %v240
      %v242 = vrot.slane %v228, %v241
      %v245 = vlaneseq
      %v246 = vshrl.u32 %v245, 7
      %v247 = vsub.s32 0, %v246
      %v248 = vrot.slane %v238, %v247
      %v249 = vlaneseq
      %v250 = vshrl.u32 %v249, 7
      %v251 = vsub.s32 0, %v250
      %v252 = vrot.slane %v242, %v251
      %v253 = vmul.f32 %v232, %v248
      %v254 = vmul.f32 %v232, %v252
      %255 = vset.pattern.permute.xlu0 1
      %256 = vperm.xlu0 %255, %v225
      %v257 = vpop.permute.xlu0 %256
      %v259 = vlaneseq
      %v260 = vshrl.u32 %v259, 7
      %v261 = vsub.s32 1, %v260
      %v262 = vrot.slane %v228, %v261
      %v263 = vlaneseq
      %v264 = vshrl.u32 %v263, 7
      %v265 = vsub.s32 5, %v264
      %v266 = vrot.slane %v228, %v265
      %v269 = vlaneseq
      %v270 = vshrl.u32 %v269, 7
      %v271 = vsub.s32 1, %v270
      %v272 = vrot.slane %v262, %v271
      %v273 = vlaneseq
      %v274 = vshrl.u32 %v273, 7
      %v275 = vsub.s32 1, %v274
      %v276 = vrot.slane %v266, %v275
      %v277 = vmul.f32 %v257, %v272
      %v278 = vmul.f32 %v257, %v276
      %v279 = vadd.f32 %v253, %v277
      %v280 = vadd.f32 %v254, %v278
      %281 = vset.pattern.permute.xlu0 2
      %282 = vperm.xlu0 %281, %v225
      %v283 = vpop.permute.xlu0 %282
      %v285 = vlaneseq
      %v286 = vshrl.u32 %v285, 7
      %v287 = vsub.s32 2, %v286
      %v288 = vrot.slane %v228, %v287
      %v289 = vlaneseq
      %v290 = vshrl.u32 %v289, 7
      %v291 = vsub.s32 6, %v290
      %v292 = vrot.slane %v228, %v291
      %v295 = vlaneseq
      %v296 = vshrl.u32 %v295, 7
      %v297 = vsub.s32 2, %v296
      %v298 = vrot.slane %v288, %v297
      %v299 = vlaneseq
      %v300 = vshrl.u32 %v299, 7
      %v301 = vsub.s32 2, %v300
      %v302 = vrot.slane %v292, %v301
      %v303 = vmul.f32 %v283, %v298
      %v304 = vmul.f32 %v283, %v302
      %v305 = vadd.f32 %v279, %v303
      %v306 = vadd.f32 %v280, %v304
      %307 = vset.pattern.permute.xlu0 3
      %308 = vperm.xlu0 %307, %v225
      %v309 = vpop.permute.xlu0 %308
      %v311 = vlaneseq
      %v312 = vshrl.u32 %v311, 7
      %v313 = vsub.s32 3, %v312
      %v314 = vrot.slane %v228, %v313
      %v315 = vlaneseq
      %v316 = vshrl.u32 %v315, 7
      %v317 = vsub.s32 7, %v316
      %v318 = vrot.slane %v228, %v317
      %v321 = vlaneseq
      %v322 = vshrl.u32 %v321, 7
      %v323 = vsub.s32 3, %v322
      %v324 = vrot.slane %v314, %v323
      %v325 = vlaneseq
      %v326 = vshrl.u32 %v325, 7
      %v327 = vsub.s32 3, %v326
      %v328 = vrot.slane %v318, %v327
      %v329 = vmul.f32 %v309, %v324
      %v330 = vmul.f32 %v309, %v328
      %v331 = vadd.f32 %v305, %v329
      %v332 = vadd.f32 %v306, %v330
      %334 = vset.pattern.permute.xlu0 0
      %335 = vperm.xlu0 %334, %v226
      %v336 = vpop.permute.xlu0 %335
      %v338 = vadd.f32 %v331, %v336
      %v339 = vadd.f32 %v332, %v336
      %v340 = vmax.f32 %v338, 0.0
      %v341 = vmax.f32 %v339, 0.0
      %342 = vrot.lane.b32.xlu0 %v340, 17
      %v343 = vpop.permute.xlu0 %342
      %344 = vrot.lane.b32.xlu0 %v341, 17
      %v345 = vpop.permute.xlu0 %344
      %v346 = vlaneseq
      %v347 = vand.u32 %v346, 127
      %vm348 = vcmp.lt.s32.totalorder %v347, 17
      %v349 = vsel %vm348, %v343, %v345
      %v350 = vsel %vm348, %v345, %v343
      %v351 = vld [vmem:[%s3] sm:$0xff]
      %v353 = vcombine.high %v351, %v351
      %v355 = vmul.f32 %v350, %v351
      %v356 = vmul.f32 %v349, %v353
      %357 = vrot.lane.b32.xlu0 %v340, 16
      %v358 = vpop.permute.xlu0 %357
      %359 = vrot.lane.b32.xlu0 %v341, 16
      %v360 = vpop.permute.xlu0 %359
      %vm361 = vcmp.lt.s32.totalorder %v347, 16
      %v362 = vsel %vm361, %v358, %v360
      %v363 = vsel %vm361, %v360, %v358
      %s364 = scalar_lea.vmem %s3, 8
      %v365 = vld [vmem:[%s364] sm:$0xff]
      %v367 = vcombine.high %v365, %v365
      %v369 = vmul.f32 %v363, %v365
      %v370 = vmul.f32 %v362, %v367
      %v371 = vadd.f32 %v355, %v369
      %v372 = vadd.f32 %v356, %v370
      %373 = vrot.lane.b32.xlu0 %v340, 15
      %v374 = vpop.permute.xlu0 %373
      %375 = vrot.lane.b32.xlu0 %v341, 15
      %v376 = vpop.permute.xlu0 %375
      %vm377 = vcmp.lt.s32.totalorder %v347, 15
      %v378 = vsel %vm377, %v374, %v376
      %v379 = vsel %vm377, %v376, %v374
      %s380 = scalar_lea.vmem %s3, 16
      %v381 = vld [vmem:[%s380] sm:$0xff]
      %v383 = vcombine.high %v381, %v381
      %v385 = vmul.f32 %v379, %v381
      %v386 = vmul.f32 %v378, %v383
      %v387 = vadd.f32 %v371, %v385
      %v388 = vadd.f32 %v372, %v386
      %389 = vrot.lane.b32.xlu0 %v340, 1
      %v390 = vpop.permute.xlu0 %389
      %391 = vrot.lane.b32.xlu0 %v341, 1
      %v392 = vpop.permute.xlu0 %391
      %vm393 = vcmp.lt.s32.totalorder %v347, 1
      %v394 = vsel %vm393, %v390, %v392
      %v395 = vsel %vm393, %v392, %v390
      %s396 = scalar_lea.vmem %s3, 24
      %v397 = vld [vmem:[%s396] sm:$0xff]
      %v399 = vcombine.high %v397, %v397
      %v401 = vmul.f32 %v395, %v397
      %v402 = vmul.f32 %v394, %v399
      %v403 = vadd.f32 %v387, %v401
      %v404 = vadd.f32 %v388, %v402
      %s405 = scalar_lea.vmem %s3, 32
      %v406 = vld [vmem:[%s405] sm:$0xff]
      %v408 = vcombine.high %v406, %v406
      %v410 = vmul.f32 %v340, %v406
      %v411 = vmul.f32 %v341, %v408
      %v412 = vadd.f32 %v403, %v410
      %v413 = vadd.f32 %v404, %v411
      %414 = vrot.lane.b32.xlu0 %v340, 127
      %v415 = vpop.permute.xlu0 %414
      %416 = vrot.lane.b32.xlu0 %v341, 127
      %v417 = vpop.permute.xlu0 %416
      %vm418 = vcmp.lt.s32.totalorder %v347, 127
      %v419 = vsel %vm418, %v415, %v417
      %v420 = vsel %vm418, %v417, %v415
      %s421 = scalar_lea.vmem %s3, 40
      %v422 = vld [vmem:[%s421] sm:$0xff]
      %v424 = vcombine.high %v422, %v422
      %v426 = vmul.f32 %v419, %v422
      %v427 = vmul.f32 %v420, %v424
      %v428 = vadd.f32 %v412, %v426
      %v429 = vadd.f32 %v413, %v427
      %430 = vrot.lane.b32.xlu0 %v340, 113
      %v431 = vpop.permute.xlu0 %430
      %432 = vrot.lane.b32.xlu0 %v341, 113
      %v433 = vpop.permute.xlu0 %432
      %vm434 = vcmp.lt.s32.totalorder %v347, 113
      %v435 = vsel %vm434, %v431, %v433
      %v436 = vsel %vm434, %v433, %v431
      %s437 = scalar_lea.vmem %s3, 48
      %v438 = vld [vmem:[%s437] sm:$0xff]
      %v440 = vcombine.high %v438, %v438
      %v442 = vmul.f32 %v435, %v438
      %v443 = vmul.f32 %v436, %v440
      %v444 = vadd.f32 %v428, %v442
      %v445 = vadd.f32 %v429, %v443
      %446 = vrot.lane.b32.xlu0 %v340, 112
      %v447 = vpop.permute.xlu0 %446
      %448 = vrot.lane.b32.xlu0 %v341, 112
      %v449 = vpop.permute.xlu0 %448
      %vm450 = vcmp.lt.s32.totalorder %v347, 112
      %v451 = vsel %vm450, %v447, %v449
      %v452 = vsel %vm450, %v449, %v447
      %s453 = scalar_lea.vmem %s3, 56
      %v454 = vld [vmem:[%s453] sm:$0xff]
      %v456 = vcombine.high %v454, %v454
      %v458 = vmul.f32 %v451, %v454
      %v459 = vmul.f32 %v452, %v456
      %v460 = vadd.f32 %v444, %v458
      %v461 = vadd.f32 %v445, %v459
      %462 = vrot.lane.b32.xlu0 %v340, 111
      %v463 = vpop.permute.xlu0 %462
      %464 = vrot.lane.b32.xlu0 %v341, 111
      %v465 = vpop.permute.xlu0 %464
      %vm466 = vcmp.lt.s32.totalorder %v347, 111
      %v467 = vsel %vm466, %v463, %v465
      %v468 = vsel %vm466, %v465, %v463
      %s469 = scalar_lea.vmem %s3, 64
      %v470 = vld [vmem:[%s469] sm:$0xff]
      %v472 = vcombine.high %v470, %v470
      %v474 = vmul.f32 %v467, %v470
      %v475 = vmul.f32 %v468, %v472
      %v476 = vadd.f32 %v460, %v474
      %v477 = vadd.f32 %v461, %v475
      %479 = vset.pattern.permute.xlu0 0
      %480 = vperm.xlu0 %479, %v227
      %v481 = vpop.permute.xlu0 %480
      %v483 = vadd.f32 %v476, %v481
      %v484 = vadd.f32 %v477, %v481
      %v485 = vmax.f32 %v483, 0.0
      %v486 = vmax.f32 %v484, 0.0
      %v487 = vpack.c.bf16 %v340, %v340
      %v488 = vpack.c.bf16 %v341, %v341
      %v491 = vcombine.low %v487, %v488
      %v493 = vunpack.c.l.s4 1983009808
      %v494 = vunpack.c.0.s8 %v493
      %v495 = vlaneseq
      %v496 = vshrl.u32 %v495, 7
      %v497 = vsub.s32 %v494, %v496
      %v498 = vrot.slane %v491, %v497
      %500 = vst [vmem:[%s224] sm:$0xf] %v498
      %v501 = vpack.c.bf16 %v485, %v485
      %v502 = vpack.c.bf16 %v486, %v486
      %v505 = vcombine.low %v501, %v502
      %v507 = vunpack.c.l.s4 1983009808
      %v508 = vunpack.c.0.s8 %v507
      %v509 = vlaneseq
      %v510 = vshrl.u32 %v509, 7
      %v511 = vsub.s32 %v508, %v510
      %v512 = vrot.slane %v505, %v511
      %s514 = scalar_lea.vmem %s224, 4
      %515 = vst [vmem:[%s514] sm:$0xf] %v512
      %p516 = scmp.lt.s32.totalorder %s16, 1
      %s517 = scalar_select %p516, %s16, 1
      %s518 = smul.addr %s517, 4
      %s519 = smul.addr %s518, 2
      %s520 = scalar_lea.vmem %s5, %s519
      // Predicated region
      $region41: #{ghost_module_forward.1} parent=39 // pred_check
        %p521 = pneg %p144
      $region42: #{ghost_module_forward.1} parent=39 // pred_check_branch
        %523 = sbr.rel (%p521) target = $region44
      $region43: #{ghost_module_forward.1} parent=39 // pred_region
        _
      $region44: #{ghost_module_forward.1} parent=39 // pred_fallthru
        _
    $region40: #{ghost_module_forward.1} parent=5 // pred_fallthru
      _
    %p524 = scmp.le.s32.totalorder 2, %s11
    // Predicated region
    $region45: #{ghost_module_forward.1} parent=5 // pred_check
      %p525 = pneg %p524
    $region46: #{ghost_module_forward.1} parent=5 // pred_check_branch
      %527 = sbr.rel (%p525) target = $region48
    $region47: #{ghost_module_forward.1} parent=5 // pred_region
      %s528 = ssub.s32 %s11, 2
      // Predicated region
      $region49: #{ghost_module_forward.1} parent=47 // pred_check
        %p529 = pneg %p150
      $region50: #{ghost_module_forward.1} parent=47 // pred_check_branch
        %531 = sbr.rel (%p529) target = $region52
      $region51: #{ghost_module_forward.1} parent=47 // pred_region
        %p532 = scmp.lt.s32.totalorder %s17, 1
        %s533 = scalar_select %p532, %s17, 1
        %s534 = smul.addr %s533, 4
        %s535 = smul.addr %s534, 2
        %s536 = scalar_lea.vmem %s5, %s535
      $region52: #{ghost_module_forward.1} parent=47 // pred_fallthru
        _
    $region48: #{ghost_module_forward.1} parent=5 // pred_fallthru
      _
  $region6: #{ghost_module_forward.1} parent=0 // loop_footer
    %s15 = sadd.s32 1, %s11
  $region7: #{ghost_module_forward.1} parent=0 // loop_footer_branch
    %10 = sbr.rel target = $region3
  $region8: #{ghost_module_forward.1} parent=0 // loop_exit
    _

</llo_original>
